<compile_context>
chip_gen: v6e
topology: v6e:2x2x1
jax: 0.10.0
libtpu: 0.0.40
codegen_flags: <defaults>
</compile_context>

<pallas_src>
import jax
import jax.numpy as jnp
from jax.experimental import pallas as pl
from jax.experimental.pallas import tpu as pltpu

LN_EPS = 1e-5   # PyTorch nn.LayerNorm default


def _layernorm(x, gamma, beta):
    # x: [TB, F] f32; normalize over last axis, biased variance (PyTorch
    # semantics).  Single pass over the tile: var = E[x^2] - E[x]^2.
    mean = jnp.mean(x, axis=-1, keepdims=True)
    mean_sq = jnp.mean(x * x, axis=-1, keepdims=True)
    var = mean_sq - mean * mean
    inv = jax.lax.rsqrt(var + LN_EPS)            # EUP slot
    return (x - mean) * inv * gamma + beta


def _mlp_kernel(x_ref,
                w1_ref, b1_ref, g1_ref, be1_ref,
                w2_ref, b2_ref, g2_ref, be2_ref,
                w3_ref, b3_ref,
                o_ref):
    mxu_dtype = w1_ref.dtype                     # bf16 MXU inputs, f32 accumulation
    x = x_ref[...].astype(mxu_dtype)             # no-op if x already bf16

    # --- fc1a + LayerNorm(fc1_dims) + relu ---
    a = jnp.dot(x, w1_ref[...], preferred_element_type=jnp.float32) + b1_ref[...]
    a = jnp.maximum(_layernorm(a, g1_ref[...], be1_ref[...]), 0.0)

    # --- fc2a + LayerNorm(fc2_dims) + relu ---
    a = jnp.dot(a.astype(mxu_dtype), w2_ref[...],
                preferred_element_type=jnp.float32) + b2_ref[...]
    a = jnp.maximum(_layernorm(a, g2_ref[...], be2_ref[...]), 0.0)

    # --- mua + sigmoid (only the real out_dim columns) ---
    a = jnp.dot(a.astype(mxu_dtype), w3_ref[...],
                preferred_element_type=jnp.float32) + b3_ref[...]
    o_ref[...] = jax.nn.sigmoid(a).astype(o_ref.dtype)


def init_params(key, input_dims, fc1_dims, fc2_dims, out_dim):
    """Deterministic init mirroring the module's __init__ uniform ranges.
    Linear weights are stored transposed: [in, out]. All float32."""
    k1, k2, k3, k4, k5, k6 = jax.random.split(key, 6)
    f1 = 1.0 / jnp.sqrt(jnp.float32(fc1_dims))   # fc1a.weight.size()[0] == fc1_dims
    f2 = 1.0 / jnp.sqrt(jnp.float32(fc2_dims))   # fc2a.weight.size()[0] == fc2_dims
    f3 = 0.003

    u = lambda k, shape, lim: jax.random.uniform(
        k, shape, jnp.float32, minval=-lim, maxval=lim)

    return {
        "w1": u(k1, (input_dims, fc1_dims), f1),
        "b1": u(k2, (1, fc1_dims), f1),
        "g1": jnp.ones((1, fc1_dims), jnp.float32),
        "be1": jnp.zeros((1, fc1_dims), jnp.float32),
        "w2": u(k3, (fc1_dims, fc2_dims), f2),
        "b2": u(k4, (1, fc2_dims), f2),
        "g2": jnp.ones((1, fc2_dims), jnp.float32),
        "be2": jnp.zeros((1, fc2_dims), jnp.float32),
        "w3": u(k5, (fc2_dims, out_dim), f3),
        "b3": u(k6, (1, out_dim), f3),
    }


def prepare_params(params, mxu_dtype=jnp.bfloat16):
    """One-time prep: cast matmul weights to the MXU dtype.  Biases / LN
    parameters stay float32 (applied after f32 accumulation)."""
    return {
        "w1": params["w1"].astype(mxu_dtype),
        "b1": params["b1"], "g1": params["g1"], "be1": params["be1"],
        "w2": params["w2"].astype(mxu_dtype),
        "b2": params["b2"], "g2": params["g2"], "be2": params["be2"],
        "w3": params["w3"].astype(mxu_dtype),
        "b3": params["b3"],
    }


def network_forward(x, prepared, *, tile_b=1024, min_tiles=4):
    """x: [B, input_dims] float32 or bfloat16. prepared: output of prepare_params."""
    B, input_dims = x.shape
    out_dim = prepared["w3"].shape[1]

    # Batch tile: multiple of 8 sublanes.  Cap tb so there are >= min_tiles
    # grid steps (input DMA / output writeback hidden behind compute), then
    # round the tile count up to an even number so the "parallel" grid axis
    # splits cleanly over v7x's two TensorCores.
    tb_cap = max(8, ((pl.cdiv(B, min_tiles) + 7) // 8) * 8)
    tb = max(8, min((int(tile_b) // 8) * 8, tb_cap))
    n_tiles = pl.cdiv(B, tb)
    if n_tiles > 1 and n_tiles % 2 == 1:
        n_tiles += 1
    b_pad = n_tiles * tb
    if b_pad != B:
        x = jnp.pad(x, ((0, b_pad - B), (0, 0)))

    def resident(a):   # weights stream once and stay VMEM-resident across batch tiles
        return pl.BlockSpec(a.shape, lambda i: (0,) * a.ndim)

    weight_order = ["w1", "b1", "g1", "be1", "w2", "b2", "g2", "be2", "w3", "b3"]
    weights = [prepared[k] for k in weight_order]

    in_specs = [pl.BlockSpec((tb, input_dims), lambda i: (i, 0))]
    in_specs += [resident(a) for a in weights]

    out = pl.pallas_call(
        _mlp_kernel,
        out_shape=jax.ShapeDtypeStruct((b_pad, out_dim), jnp.float32),
        grid=(n_tiles,),
        in_specs=in_specs,
        # Narrow output block (tb, out_dim): legal (last block dim == full
        # array dim); cuts output HBM traffic ~32x vs the 128-lane padded slab.
        out_specs=pl.BlockSpec((tb, out_dim), lambda i: (i, 0)),
        compiler_params=pltpu.CompilerParams(
            dimension_semantics=("parallel",),     # megacore split on v7x
            vmem_limit_bytes=32 * 1024 * 1024,     # safe headroom on v5e/v6e/v7x
        ),
    )(x, *weights)

    if b_pad != B:
        out = out[:B]
    return out


def reference_forward(x, params, mxu_dtype=jnp.bfloat16):
    """Pure-JAX reference with the same MXU-input dtype semantics as the kernel."""
    def ln(a, g, b):
        m = jnp.mean(a, axis=-1, keepdims=True)
        msq = jnp.mean(a * a, axis=-1, keepdims=True)
        v = msq - m * m
        return (a - m) * jax.lax.rsqrt(v + LN_EPS) * g + b

    def mm(a, w):
        return jnp.dot(a.astype(mxu_dtype), w.astype(mxu_dtype),
                       preferred_element_type=jnp.float32)

    a = mm(x, params["w1"]) + params["b1"]
    a = jnp.maximum(ln(a, params["g1"], params["be1"]), 0.0)
    a = mm(a, params["w2"]) + params["b2"]
    a = jnp.maximum(ln(a, params["g2"], params["be2"]), 0.0)
    a = mm(a, params["w3"]) + params["b3"]
    return jax.nn.sigmoid(a)


if __name__ == "__main__":
    # Small shapes consistent with the module; batch chosen to exercise the
    # batch-tiled grid (4 even tiles of 16 rows) and the padding/slicing path.
    batch, input_dims, fc1_dims, fc2_dims, out_dim = 48, 32, 64, 64, 4

    key = jax.random.PRNGKey(0)
    kx, kp = jax.random.split(key)
    x = jax.random.normal(kx, (batch, input_dims), jnp.float32)
    params = init_params(kp, input_dims, fc1_dims, fc2_dims, out_dim)
    prepared = prepare_params(params)

    out = network_forward(x, prepared)
    out = jax.block_until_ready(out)

    # Same-semantics (bf16 MXU inputs) reference: tight tolerance.
    ref = reference_forward(x, params, mxu_dtype=jnp.bfloat16)
    # Full-f32 reference: loose sanity bound for the bf16 rounding.
    ref_f32 = reference_forward(x, params, mxu_dtype=jnp.float32)

    assert out.shape == (batch, out_dim)
    assert jnp.allclose(out, ref, atol=1e-5, rtol=1e-4), \
        float(jnp.max(jnp.abs(out - ref)))
    assert jnp.allclose(out, ref_f32, atol=2e-2), \
        float(jnp.max(jnp.abs(out - ref_f32)))

    print("KERNEL_OK")
</pallas_src>

<mosaic_0001>
module attributes {stable_mosaic.version = 11 : i64} {
  func.func @_mlp_kernel(%arg0: i32, %arg1: memref<16x32xf32, #tpu.memory_space<vmem>>, %arg2: memref<32x64xbf16, #tpu.memory_space<vmem>>, %arg3: memref<1x64xf32, #tpu.memory_space<vmem>>, %arg4: memref<1x64xf32, #tpu.memory_space<vmem>>, %arg5: memref<1x64xf32, #tpu.memory_space<vmem>>, %arg6: memref<64x64xbf16, #tpu.memory_space<vmem>>, %arg7: memref<1x64xf32, #tpu.memory_space<vmem>>, %arg8: memref<1x64xf32, #tpu.memory_space<vmem>>, %arg9: memref<1x64xf32, #tpu.memory_space<vmem>>, %arg10: memref<64x4xbf16, #tpu.memory_space<vmem>>, %arg11: memref<1x4xf32, #tpu.memory_space<vmem>>, %arg12: memref<16x4xf32, #tpu.memory_space<vmem>>) attributes {dimension_semantics = [#tpu.dimension_semantics<parallel>], iteration_bounds = array<i64: 4>, scalar_prefetch = 0 : i64, scratch_operands = 0 : i64, tpu.core_type = #tpu.core_type<tc>, window_params = [{transform_indices = @transform_0, window_bounds = array<i64: 16, 32>}, {pipeline_mode = #tpu.pipeline_mode<synchronous>, transform_indices = @transform_1, window_bounds = array<i64: 32, 64>}, {pipeline_mode = #tpu.pipeline_mode<synchronous>, transform_indices = @transform_2, window_bounds = array<i64: 1, 64>}, {pipeline_mode = #tpu.pipeline_mode<synchronous>, transform_indices = @transform_3, window_bounds = array<i64: 1, 64>}, {pipeline_mode = #tpu.pipeline_mode<synchronous>, transform_indices = @transform_4, window_bounds = array<i64: 1, 64>}, {pipeline_mode = #tpu.pipeline_mode<synchronous>, transform_indices = @transform_5, window_bounds = array<i64: 64, 64>}, {pipeline_mode = #tpu.pipeline_mode<synchronous>, transform_indices = @transform_6, window_bounds = array<i64: 1, 64>}, {pipeline_mode = #tpu.pipeline_mode<synchronous>, transform_indices = @transform_7, window_bounds = array<i64: 1, 64>}, {pipeline_mode = #tpu.pipeline_mode<synchronous>, transform_indices = @transform_8, window_bounds = array<i64: 1, 64>}, {pipeline_mode = #tpu.pipeline_mode<synchronous>, transform_indices = @transform_9, window_bounds = array<i64: 64, 4>}, {pipeline_mode = #tpu.pipeline_mode<synchronous>, transform_indices = @transform_10, window_bounds = array<i64: 1, 4>}, {transform_indices = @transform_11, window_bounds = array<i64: 16, 4>}]} {
    %c0 = arith.constant 0 : index
    %c0_0 = arith.constant 0 : index
    %0 = vector.load %arg1[%c0, %c0_0] : memref<16x32xf32, #tpu.memory_space<vmem>>, vector<16x32xf32>
    %1 = arith.truncf %0 : vector<16x32xf32> to vector<16x32xbf16>
    %c0_1 = arith.constant 0 : index
    %c0_2 = arith.constant 0 : index
    %2 = vector.load %arg2[%c0_1, %c0_2] : memref<32x64xbf16, #tpu.memory_space<vmem>>, vector<32x64xbf16>
    %cst = arith.constant dense<0.000000e+00> : vector<16x64xf32>
    %3 = tpu.matmul %1, %2, %cst {dimension_numbers = #tpu.dot_dimension_numbers<[1], [0], [0], [1], [0, 0, 1, 1], [], []>} : vector<16x32xbf16>, vector<32x64xbf16>, vector<16x64xf32> -> vector<16x64xf32>
    %c0_3 = arith.constant 0 : index
    %c0_4 = arith.constant 0 : index
    %4 = vector.load %arg3[%c0_3, %c0_4] : memref<1x64xf32, #tpu.memory_space<vmem>>, vector<1x64xf32>
    %5 = vector.broadcast %4 : vector<1x64xf32> to vector<16x64xf32>
    %6 = arith.addf %3, %5 : vector<16x64xf32>
    %c0_5 = arith.constant 0 : index
    %c0_6 = arith.constant 0 : index
    %7 = vector.load %arg4[%c0_5, %c0_6] : memref<1x64xf32, #tpu.memory_space<vmem>>, vector<1x64xf32>
    %c0_7 = arith.constant 0 : index
    %c0_8 = arith.constant 0 : index
    %8 = vector.load %arg5[%c0_7, %c0_8] : memref<1x64xf32, #tpu.memory_space<vmem>>, vector<1x64xf32>
    %cst_9 = arith.constant dense<0.000000e+00> : vector<16xf32>
    %9 = vector.multi_reduction <add>, %6, %cst_9 [1] : vector<16x64xf32> to vector<16xf32>
    %10 = vector.shape_cast %9 : vector<16xf32> to vector<16x1xf32>
    %cst_10 = arith.constant 6.400000e+01 : f32
    %11 = vector.broadcast %cst_10 : f32 to vector<16x1xf32>
    %12 = arith.divf %10, %11 : vector<16x1xf32>
    %13 = arith.mulf %6, %6 : vector<16x64xf32>
    %cst_11 = arith.constant dense<0.000000e+00> : vector<16xf32>
    %14 = vector.multi_reduction <add>, %13, %cst_11 [1] : vector<16x64xf32> to vector<16xf32>
    %15 = vector.shape_cast %14 : vector<16xf32> to vector<16x1xf32>
    %cst_12 = arith.constant 6.400000e+01 : f32
    %16 = vector.broadcast %cst_12 : f32 to vector<16x1xf32>
    %17 = arith.divf %15, %16 : vector<16x1xf32>
    %18 = arith.mulf %12, %12 : vector<16x1xf32>
    %19 = arith.subf %17, %18 : vector<16x1xf32>
    %cst_13 = arith.constant 9.99999974E-6 : f32
    %20 = vector.broadcast %cst_13 : f32 to vector<16x1xf32>
    %21 = arith.addf %19, %20 : vector<16x1xf32>
    %22 = math.rsqrt %21 : vector<16x1xf32>
    %23 = vector.broadcast %12 : vector<16x1xf32> to vector<16x64xf32>
    %24 = arith.subf %6, %23 : vector<16x64xf32>
    %25 = vector.broadcast %22 : vector<16x1xf32> to vector<16x64xf32>
    %26 = arith.mulf %24, %25 : vector<16x64xf32>
    %27 = vector.broadcast %7 : vector<1x64xf32> to vector<16x64xf32>
    %28 = arith.mulf %26, %27 : vector<16x64xf32>
    %29 = vector.broadcast %8 : vector<1x64xf32> to vector<16x64xf32>
    %30 = arith.addf %28, %29 : vector<16x64xf32>
    %cst_14 = arith.constant 0.000000e+00 : f32
    %31 = vector.broadcast %cst_14 : f32 to vector<16x64xf32>
    %32 = arith.maximumf %30, %31 : vector<16x64xf32>
    %33 = arith.truncf %32 : vector<16x64xf32> to vector<16x64xbf16>
    %c0_15 = arith.constant 0 : index
    %c0_16 = arith.constant 0 : index
    %34 = vector.load %arg6[%c0_15, %c0_16] : memref<64x64xbf16, #tpu.memory_space<vmem>>, vector<64x64xbf16>
    %cst_17 = arith.constant dense<0.000000e+00> : vector<16x64xf32>
    %35 = tpu.matmul %33, %34, %cst_17 {dimension_numbers = #tpu.dot_dimension_numbers<[1], [0], [0], [1], [0, 0, 1, 1], [], []>} : vector<16x64xbf16>, vector<64x64xbf16>, vector<16x64xf32> -> vector<16x64xf32>
    %c0_18 = arith.constant 0 : index
    %c0_19 = arith.constant 0 : index
    %36 = vector.load %arg7[%c0_18, %c0_19] : memref<1x64xf32, #tpu.memory_space<vmem>>, vector<1x64xf32>
    %37 = vector.broadcast %36 : vector<1x64xf32> to vector<16x64xf32>
    %38 = arith.addf %35, %37 : vector<16x64xf32>
    %c0_20 = arith.constant 0 : index
    %c0_21 = arith.constant 0 : index
    %39 = vector.load %arg8[%c0_20, %c0_21] : memref<1x64xf32, #tpu.memory_space<vmem>>, vector<1x64xf32>
    %c0_22 = arith.constant 0 : index
    %c0_23 = arith.constant 0 : index
    %40 = vector.load %arg9[%c0_22, %c0_23] : memref<1x64xf32, #tpu.memory_space<vmem>>, vector<1x64xf32>
    %cst_24 = arith.constant dense<0.000000e+00> : vector<16xf32>
    %41 = vector.multi_reduction <add>, %38, %cst_24 [1] : vector<16x64xf32> to vector<16xf32>
    %42 = vector.shape_cast %41 : vector<16xf32> to vector<16x1xf32>
    %cst_25 = arith.constant 6.400000e+01 : f32
    %43 = vector.broadcast %cst_25 : f32 to vector<16x1xf32>
    %44 = arith.divf %42, %43 : vector<16x1xf32>
    %45 = arith.mulf %38, %38 : vector<16x64xf32>
    %cst_26 = arith.constant dense<0.000000e+00> : vector<16xf32>
    %46 = vector.multi_reduction <add>, %45, %cst_26 [1] : vector<16x64xf32> to vector<16xf32>
    %47 = vector.shape_cast %46 : vector<16xf32> to vector<16x1xf32>
    %cst_27 = arith.constant 6.400000e+01 : f32
    %48 = vector.broadcast %cst_27 : f32 to vector<16x1xf32>
    %49 = arith.divf %47, %48 : vector<16x1xf32>
    %50 = arith.mulf %44, %44 : vector<16x1xf32>
    %51 = arith.subf %49, %50 : vector<16x1xf32>
    %cst_28 = arith.constant 9.99999974E-6 : f32
    %52 = vector.broadcast %cst_28 : f32 to vector<16x1xf32>
    %53 = arith.addf %51, %52 : vector<16x1xf32>
    %54 = math.rsqrt %53 : vector<16x1xf32>
    %55 = vector.broadcast %44 : vector<16x1xf32> to vector<16x64xf32>
    %56 = arith.subf %38, %55 : vector<16x64xf32>
    %57 = vector.broadcast %54 : vector<16x1xf32> to vector<16x64xf32>
    %58 = arith.mulf %56, %57 : vector<16x64xf32>
    %59 = vector.broadcast %39 : vector<1x64xf32> to vector<16x64xf32>
    %60 = arith.mulf %58, %59 : vector<16x64xf32>
    %61 = vector.broadcast %40 : vector<1x64xf32> to vector<16x64xf32>
    %62 = arith.addf %60, %61 : vector<16x64xf32>
    %cst_29 = arith.constant 0.000000e+00 : f32
    %63 = vector.broadcast %cst_29 : f32 to vector<16x64xf32>
    %64 = arith.maximumf %62, %63 : vector<16x64xf32>
    %65 = arith.truncf %64 : vector<16x64xf32> to vector<16x64xbf16>
    %c0_30 = arith.constant 0 : index
    %c0_31 = arith.constant 0 : index
    %66 = vector.load %arg10[%c0_30, %c0_31] : memref<64x4xbf16, #tpu.memory_space<vmem>>, vector<64x4xbf16>
    %cst_32 = arith.constant dense<0.000000e+00> : vector<16x4xf32>
    %67 = tpu.matmul %65, %66, %cst_32 {dimension_numbers = #tpu.dot_dimension_numbers<[1], [0], [0], [1], [0, 0, 1, 1], [], []>} : vector<16x64xbf16>, vector<64x4xbf16>, vector<16x4xf32> -> vector<16x4xf32>
    %c0_33 = arith.constant 0 : index
    %c0_34 = arith.constant 0 : index
    %68 = vector.load %arg11[%c0_33, %c0_34] : memref<1x4xf32, #tpu.memory_space<vmem>>, vector<1x4xf32>
    %69 = vector.broadcast %68 : vector<1x4xf32> to vector<16x4xf32>
    %70 = arith.addf %67, %69 : vector<16x4xf32>
    %71 = arith.negf %70 : vector<16x4xf32>
    %72 = math.exp %71 : vector<16x4xf32>
    %cst_35 = arith.constant 1.000000e+00 : f32
    %73 = vector.broadcast %cst_35 : f32 to vector<16x4xf32>
    %74 = arith.addf %73, %72 : vector<16x4xf32>
    %75 = arith.divf %73, %74 : vector<16x4xf32>
    %c0_36 = arith.constant 0 : index
    %c0_37 = arith.constant 0 : index
    %76 = vector.load %arg12[%c0_36, %c0_37] : memref<16x4xf32, #tpu.memory_space<vmem>>, vector<16x4xf32>
    tpu.vector_store %arg12[%c0_36, %c0_37], %75 {strides = array<i32>} : memref<16x4xf32, #tpu.memory_space<vmem>>, vector<16x4xf32>,
    return
  }
  func.func @transform_0(%arg0: i32) -> (i32, i32) {
    %c0_i32 = arith.constant 0 : i32
    %c0_i32_0 = arith.constant 0 : i32
    return %arg0, %c0_i32 : i32, i32
  }
  func.func @transform_1(%arg0: i32) -> (i32, i32) {
    %c0_i32 = arith.constant 0 : i32
    %c0_i32_0 = arith.constant 0 : i32
    %c0_i32_1 = arith.constant 0 : i32
    return %c0_i32, %c0_i32_0 : i32, i32
  }
  func.func @transform_2(%arg0: i32) -> (i32, i32) {
    %c0_i32 = arith.constant 0 : i32
    %c0_i32_0 = arith.constant 0 : i32
    %c0_i32_1 = arith.constant 0 : i32
    return %c0_i32, %c0_i32_0 : i32, i32
  }
  func.func @transform_3(%arg0: i32) -> (i32, i32) {
    %c0_i32 = arith.constant 0 : i32
    %c0_i32_0 = arith.constant 0 : i32
    %c0_i32_1 = arith.constant 0 : i32
    return %c0_i32, %c0_i32_0 : i32, i32
  }
  func.func @transform_4(%arg0: i32) -> (i32, i32) {
    %c0_i32 = arith.constant 0 : i32
    %c0_i32_0 = arith.constant 0 : i32
    %c0_i32_1 = arith.constant 0 : i32
    return %c0_i32, %c0_i32_0 : i32, i32
  }
  func.func @transform_5(%arg0: i32) -> (i32, i32) {
    %c0_i32 = arith.constant 0 : i32
    %c0_i32_0 = arith.constant 0 : i32
    %c0_i32_1 = arith.constant 0 : i32
    return %c0_i32, %c0_i32_0 : i32, i32
  }
  func.func @transform_6(%arg0: i32) -> (i32, i32) {
    %c0_i32 = arith.constant 0 : i32
    %c0_i32_0 = arith.constant 0 : i32
    %c0_i32_1 = arith.constant 0 : i32
    return %c0_i32, %c0_i32_0 : i32, i32
  }
  func.func @transform_7(%arg0: i32) -> (i32, i32) {
    %c0_i32 = arith.constant 0 : i32
    %c0_i32_0 = arith.constant 0 : i32
    %c0_i32_1 = arith.constant 0 : i32
    return %c0_i32, %c0_i32_0 : i32, i32
  }
  func.func @transform_8(%arg0: i32) -> (i32, i32) {
    %c0_i32 = arith.constant 0 : i32
    %c0_i32_0 = arith.constant 0 : i32
    %c0_i32_1 = arith.constant 0 : i32
    return %c0_i32, %c0_i32_0 : i32, i32
  }
  func.func @transform_9(%arg0: i32) -> (i32, i32) {
    %c0_i32 = arith.constant 0 : i32
    %c0_i32_0 = arith.constant 0 : i32
    %c0_i32_1 = arith.constant 0 : i32
    return %c0_i32, %c0_i32_0 : i32, i32
  }
  func.func @transform_10(%arg0: i32) -> (i32, i32) {
    %c0_i32 = arith.constant 0 : i32
    %c0_i32_0 = arith.constant 0 : i32
    %c0_i32_1 = arith.constant 0 : i32
    return %c0_i32, %c0_i32_0 : i32, i32
  }
  func.func @transform_11(%arg0: i32) -> (i32, i32) {
    %c0_i32 = arith.constant 0 : i32
    %c0_i32_0 = arith.constant 0 : i32
    return %arg0, %c0_i32 : i32, i32
  }
}

</mosaic_0001>

<llo_original>
// kernel: tpu_custom_call.1
$region0: #{tpu_custom_call.1}
  #allocation0 [shape = 'u32[]', space=smem, size = 0x4, offset = 0x4, fixed_abs, tag = 'smem constant byte address 0x4 - core index']
  #allocation1 [shape = 'u32[144,128]{1,0:T(1,128)}', space=vmem, size = 0x12000, scoped, tag = 'internal scratch']
  %s0 = inlined_call_operand.vmem [shape: f32[64,32], index: 0, kind: input, shape index: {}]
  %s1 = inlined_call_operand.vmem [shape: bf16[32,64], index: 1, kind: input, shape index: {}]
  %s2 = inlined_call_operand.vmem [shape: f32[1,64], index: 2, kind: input, shape index: {}]
  %s3 = inlined_call_operand.vmem [shape: f32[1,64], index: 3, kind: input, shape index: {}]
  %s4 = inlined_call_operand.vmem [shape: f32[1,64], index: 4, kind: input, shape index: {}]
  %s5 = inlined_call_operand.vmem [shape: bf16[64,64], index: 5, kind: input, shape index: {}]
  %s6 = inlined_call_operand.vmem [shape: f32[1,64], index: 6, kind: input, shape index: {}]
  %s7 = inlined_call_operand.vmem [shape: f32[1,64], index: 7, kind: input, shape index: {}]
  %s8 = inlined_call_operand.vmem [shape: f32[1,64], index: 8, kind: input, shape index: {}]
  %s9 = inlined_call_operand.vmem [shape: bf16[64,4], index: 9, kind: input, shape index: {}]
  %s10 = inlined_call_operand.vmem [shape: f32[1,4], index: 10, kind: input, shape index: {}]
  %s11 = inlined_call_operand.vmem [shape: f32[64,4], index: 11, kind: output, shape index: {}]
  %s12 = sld [smem:[#allocation0]]
  $region77: #{tpu_custom_call.1} parent=0
    _
  %s14 = ssub.s32 1, %s12
  %s15 = scalar_select 0, %s14, %s12
  loop: start=0, step=1, limit=6
  $region2: #{tpu_custom_call.1} parent=0 // loop_pre_header
    _
  $region3: #{tpu_custom_call.1} parent=0 // loop_header
    %s17 = sphi 0, %s21
    %p18 = scmp.ge.s32.totalorder %s17, 6
    %s27 = sphi 0, %s29
    %s30 = sphi 0, %s27
    %s31 = sphi 0, %s30
    %s47 = sphi 0, %s31
    %s51 = sphi 0, %s51
    %s53 = sphi 0, %s51
    %s54 = sphi 0, %s53
    %s68 = sphi 0, %s54
    %s72 = sphi 0, %s72
    %s74 = sphi 0, %s72
    %s75 = sphi 0, %s74
    %s89 = sphi 0, %s75
    %s93 = sphi 0, %s93
    %s95 = sphi 0, %s93
    %s96 = sphi 0, %s95
    %s110 = sphi 0, %s96
    %s114 = sphi 0, %s114
    %s116 = sphi 0, %s114
    %s117 = sphi 0, %s116
    %s131 = sphi 0, %s117
    %s135 = sphi 0, %s135
    %s137 = sphi 0, %s135
    %s138 = sphi 0, %s137
    %s152 = sphi 0, %s138
    %s156 = sphi 0, %s156
    %s158 = sphi 0, %s156
    %s159 = sphi 0, %s158
    %s173 = sphi 0, %s159
    %s177 = sphi 0, %s177
    %s179 = sphi 0, %s177
    %s180 = sphi 0, %s179
    %s194 = sphi 0, %s180
    %s198 = sphi 0, %s198
    %s200 = sphi 0, %s198
    %s201 = sphi 0, %s200
    %s215 = sphi 0, %s201
    %s219 = sphi 0, %s219
    %s221 = sphi 0, %s219
    %s222 = sphi 0, %s221
    %s236 = sphi 0, %s222
    %s240 = sphi 0, %s240
    %s242 = sphi 0, %s240
    %s243 = sphi 0, %s242
    %s257 = sphi 0, %s243
    %s263 = sphi 0, %s265
    %s266 = sphi 0, %s263
    %s267 = sphi 0, %s266
    %s283 = sphi 0, %s267
  $region4: #{tpu_custom_call.1} parent=0 // loop_header_branch
    %20 = sbr.rel (%p18) target = $region8
  $region5: #{tpu_custom_call.1} parent=0 // loop_body
    %s22 = ssub.s32 %s17, 1
    %s23 = ssub.s32 %s17, 2
    %s24 = sadd.s32 %s17, 1
    %s25 = ssub.s32 %s17, %s24
    %p26 = scmp.eq.s32.totalorder %s25, 0
    %s28 = sadd.s32 %s27, 1
    %s29 = scalar_select %p26, %s27, %s28
    %p32 = pneg %p26
    %p33 = scmp.eq.s32.totalorder %s17, 3
    %p34 = por %p32, %p33
    %p35 = scmp.ne.s32.totalorder %s27, %s30
    %p36 = scmp.eq.s32.totalorder %s17, 0
    %p37 = por %p35, %p36
    %p38 = scmp.ne.s32.totalorder %s27, %s30
    %p39 = scmp.eq.s32.totalorder %s22, 3
    %p40 = por %p38, %p39
    %p41 = scmp.ne.s32.totalorder %s30, %s31
    %p42 = scmp.eq.s32.totalorder %s22, 0
    %p43 = por %p41, %p42
    %p44 = scmp.ne.s32.totalorder %s30, %s31
    %p45 = scmp.eq.s32.totalorder %s23, 3
    %p46 = por %p44, %p45
    %p48 = scmp.ne.s32.totalorder %s31, %s47
    %p49 = scmp.eq.s32.totalorder %s23, 0
    %p50 = por %p48, %p49
    %s52 = sadd.s32 %s51, 1
    %p55 = scmp.eq.s32.totalorder %s17, 3
    %p56 = scmp.ne.s32.totalorder %s51, %s53
    %p57 = scmp.eq.s32.totalorder %s17, 0
    %p58 = por %p56, %p57
    %p59 = scmp.ne.s32.totalorder %s51, %s53
    %p60 = scmp.eq.s32.totalorder %s22, 3
    %p61 = por %p59, %p60
    %p62 = scmp.ne.s32.totalorder %s53, %s54
    %p63 = scmp.eq.s32.totalorder %s22, 0
    %p64 = por %p62, %p63
    %p65 = scmp.ne.s32.totalorder %s53, %s54
    %p66 = scmp.eq.s32.totalorder %s23, 3
    %p67 = por %p65, %p66
    %p69 = scmp.ne.s32.totalorder %s54, %s68
    %p70 = scmp.eq.s32.totalorder %s23, 0
    %p71 = por %p69, %p70
    %s73 = sadd.s32 %s72, 1
    %p76 = scmp.eq.s32.totalorder %s17, 3
    %p77 = scmp.ne.s32.totalorder %s72, %s74
    %p78 = scmp.eq.s32.totalorder %s17, 0
    %p79 = por %p77, %p78
    %p80 = scmp.ne.s32.totalorder %s72, %s74
    %p81 = scmp.eq.s32.totalorder %s22, 3
    %p82 = por %p80, %p81
    %p83 = scmp.ne.s32.totalorder %s74, %s75
    %p84 = scmp.eq.s32.totalorder %s22, 0
    %p85 = por %p83, %p84
    %p86 = scmp.ne.s32.totalorder %s74, %s75
    %p87 = scmp.eq.s32.totalorder %s23, 3
    %p88 = por %p86, %p87
    %p90 = scmp.ne.s32.totalorder %s75, %s89
    %p91 = scmp.eq.s32.totalorder %s23, 0
    %p92 = por %p90, %p91
    %s94 = sadd.s32 %s93, 1
    %p97 = scmp.eq.s32.totalorder %s17, 3
    %p98 = scmp.ne.s32.totalorder %s93, %s95
    %p99 = scmp.eq.s32.totalorder %s17, 0
    %p100 = por %p98, %p99
    %p101 = scmp.ne.s32.totalorder %s93, %s95
    %p102 = scmp.eq.s32.totalorder %s22, 3
    %p103 = por %p101, %p102
    %p104 = scmp.ne.s32.totalorder %s95, %s96
    %p105 = scmp.eq.s32.totalorder %s22, 0
    %p106 = por %p104, %p105
    %p107 = scmp.ne.s32.totalorder %s95, %s96
    %p108 = scmp.eq.s32.totalorder %s23, 3
    %p109 = por %p107, %p108
    %p111 = scmp.ne.s32.totalorder %s96, %s110
    %p112 = scmp.eq.s32.totalorder %s23, 0
    %p113 = por %p111, %p112
    %s115 = sadd.s32 %s114, 1
    %p118 = scmp.eq.s32.totalorder %s17, 3
    %p119 = scmp.ne.s32.totalorder %s114, %s116
    %p120 = scmp.eq.s32.totalorder %s17, 0
    %p121 = por %p119, %p120
    %p122 = scmp.ne.s32.totalorder %s114, %s116
    %p123 = scmp.eq.s32.totalorder %s22, 3
    %p124 = por %p122, %p123
    %p125 = scmp.ne.s32.totalorder %s116, %s117
    %p126 = scmp.eq.s32.totalorder %s22, 0
    %p127 = por %p125, %p126
    %p128 = scmp.ne.s32.totalorder %s116, %s117
    %p129 = scmp.eq.s32.totalorder %s23, 3
    %p130 = por %p128, %p129
    %p132 = scmp.ne.s32.totalorder %s117, %s131
    %p133 = scmp.eq.s32.totalorder %s23, 0
    %p134 = por %p132, %p133
    %s136 = sadd.s32 %s135, 1
    %p139 = scmp.eq.s32.totalorder %s17, 3
    %p140 = scmp.ne.s32.totalorder %s135, %s137
    %p141 = scmp.eq.s32.totalorder %s17, 0
    %p142 = por %p140, %p141
    %p143 = scmp.ne.s32.totalorder %s135, %s137
    %p144 = scmp.eq.s32.totalorder %s22, 3
    %p145 = por %p143, %p144
    %p146 = scmp.ne.s32.totalorder %s137, %s138
    %p147 = scmp.eq.s32.totalorder %s22, 0
    %p148 = por %p146, %p147
    %p149 = scmp.ne.s32.totalorder %s137, %s138
    %p150 = scmp.eq.s32.totalorder %s23, 3
    %p151 = por %p149, %p150
    %p153 = scmp.ne.s32.totalorder %s138, %s152
    %p154 = scmp.eq.s32.totalorder %s23, 0
    %p155 = por %p153, %p154
    %s157 = sadd.s32 %s156, 1
    %p160 = scmp.eq.s32.totalorder %s17, 3
    %p161 = scmp.ne.s32.totalorder %s156, %s158
    %p162 = scmp.eq.s32.totalorder %s17, 0
    %p163 = por %p161, %p162
    %p164 = scmp.ne.s32.totalorder %s156, %s158
    %p165 = scmp.eq.s32.totalorder %s22, 3
    %p166 = por %p164, %p165
    %p167 = scmp.ne.s32.totalorder %s158, %s159
    %p168 = scmp.eq.s32.totalorder %s22, 0
    %p169 = por %p167, %p168
    %p170 = scmp.ne.s32.totalorder %s158, %s159
    %p171 = scmp.eq.s32.totalorder %s23, 3
    %p172 = por %p170, %p171
    %p174 = scmp.ne.s32.totalorder %s159, %s173
    %p175 = scmp.eq.s32.totalorder %s23, 0
    %p176 = por %p174, %p175
    %s178 = sadd.s32 %s177, 1
    %p181 = scmp.eq.s32.totalorder %s17, 3
    %p182 = scmp.ne.s32.totalorder %s177, %s179
    %p183 = scmp.eq.s32.totalorder %s17, 0
    %p184 = por %p182, %p183
    %p185 = scmp.ne.s32.totalorder %s177, %s179
    %p186 = scmp.eq.s32.totalorder %s22, 3
    %p187 = por %p185, %p186
    %p188 = scmp.ne.s32.totalorder %s179, %s180
    %p189 = scmp.eq.s32.totalorder %s22, 0
    %p190 = por %p188, %p189
    %p191 = scmp.ne.s32.totalorder %s179, %s180
    %p192 = scmp.eq.s32.totalorder %s23, 3
    %p193 = por %p191, %p192
    %p195 = scmp.ne.s32.totalorder %s180, %s194
    %p196 = scmp.eq.s32.totalorder %s23, 0
    %p197 = por %p195, %p196
    %s199 = sadd.s32 %s198, 1
    %p202 = scmp.eq.s32.totalorder %s17, 3
    %p203 = scmp.ne.s32.totalorder %s198, %s200
    %p204 = scmp.eq.s32.totalorder %s17, 0
    %p205 = por %p203, %p204
    %p206 = scmp.ne.s32.totalorder %s198, %s200
    %p207 = scmp.eq.s32.totalorder %s22, 3
    %p208 = por %p206, %p207
    %p209 = scmp.ne.s32.totalorder %s200, %s201
    %p210 = scmp.eq.s32.totalorder %s22, 0
    %p211 = por %p209, %p210
    %p212 = scmp.ne.s32.totalorder %s200, %s201
    %p213 = scmp.eq.s32.totalorder %s23, 3
    %p214 = por %p212, %p213
    %p216 = scmp.ne.s32.totalorder %s201, %s215
    %p217 = scmp.eq.s32.totalorder %s23, 0
    %p218 = por %p216, %p217
    %s220 = sadd.s32 %s219, 1
    %p223 = scmp.eq.s32.totalorder %s17, 3
    %p224 = scmp.ne.s32.totalorder %s219, %s221
    %p225 = scmp.eq.s32.totalorder %s17, 0
    %p226 = por %p224, %p225
    %p227 = scmp.ne.s32.totalorder %s219, %s221
    %p228 = scmp.eq.s32.totalorder %s22, 3
    %p229 = por %p227, %p228
    %p230 = scmp.ne.s32.totalorder %s221, %s222
    %p231 = scmp.eq.s32.totalorder %s22, 0
    %p232 = por %p230, %p231
    %p233 = scmp.ne.s32.totalorder %s221, %s222
    %p234 = scmp.eq.s32.totalorder %s23, 3
    %p235 = por %p233, %p234
    %p237 = scmp.ne.s32.totalorder %s222, %s236
    %p238 = scmp.eq.s32.totalorder %s23, 0
    %p239 = por %p237, %p238
    %s241 = sadd.s32 %s240, 1
    %p244 = scmp.eq.s32.totalorder %s17, 3
    %p245 = scmp.ne.s32.totalorder %s240, %s242
    %p246 = scmp.eq.s32.totalorder %s17, 0
    %p247 = por %p245, %p246
    %p248 = scmp.ne.s32.totalorder %s240, %s242
    %p249 = scmp.eq.s32.totalorder %s22, 3
    %p250 = por %p248, %p249
    %p251 = scmp.ne.s32.totalorder %s242, %s243
    %p252 = scmp.eq.s32.totalorder %s22, 0
    %p253 = por %p251, %p252
    %p254 = scmp.ne.s32.totalorder %s242, %s243
    %p255 = scmp.eq.s32.totalorder %s23, 3
    %p256 = por %p254, %p255
    %p258 = scmp.ne.s32.totalorder %s243, %s257
    %p259 = scmp.eq.s32.totalorder %s23, 0
    %p260 = por %p258, %p259
    %s261 = ssub.s32 %s17, %s24
    %p262 = scmp.eq.s32.totalorder %s261, 0
    %s264 = sadd.s32 %s263, 1
    %s265 = scalar_select %p262, %s263, %s264
    %p268 = pneg %p262
    %p269 = scmp.eq.s32.totalorder %s17, 3
    %p270 = por %p268, %p269
    %p271 = scmp.ne.s32.totalorder %s263, %s266
    %p272 = scmp.eq.s32.totalorder %s17, 0
    %p273 = por %p271, %p272
    %p274 = scmp.ne.s32.totalorder %s263, %s266
    %p275 = scmp.eq.s32.totalorder %s22, 3
    %p276 = por %p274, %p275
    %p277 = scmp.ne.s32.totalorder %s266, %s267
    %p278 = scmp.eq.s32.totalorder %s22, 0
    %p279 = por %p277, %p278
    %p280 = scmp.ne.s32.totalorder %s266, %s267
    %p281 = scmp.eq.s32.totalorder %s23, 3
    %p282 = por %p280, %p281
    %p284 = scmp.ne.s32.totalorder %s267, %s283
    %p285 = scmp.eq.s32.totalorder %s23, 0
    %p286 = por %p284, %p285
    %p287 = scmp.le.s32.totalorder 1, %s17
    %p288 = scmp.lt.s32.totalorder %s17, 5
    %p289 = pnand %p287, %p288
    %p290 = pneg %p289
    // Predicated region
    $region9: #{tpu_custom_call.1} parent=5 // pred_check
      _
    $region10: #{tpu_custom_call.1} parent=5 // pred_check_branch
      %292 = sbr.rel (%p289) target = $region12
    $region11: #{tpu_custom_call.1} parent=5 // pred_region
      %s293 = ssub.s32 %s17, 1
      // Predicated region
      $region13: #{tpu_custom_call.1} parent=11 // pred_check
        %p294 = pneg %p64
      $region14: #{tpu_custom_call.1} parent=11 // pred_check_branch
        %296 = sbr.rel (%p294) target = $region16
      $region15: #{tpu_custom_call.1} parent=11 // pred_region
        _
      $region16: #{tpu_custom_call.1} parent=11 // pred_fallthru
        _
      // Predicated region
      $region17: #{tpu_custom_call.1} parent=11 // pred_check
        %p297 = pneg %p85
      $region18: #{tpu_custom_call.1} parent=11 // pred_check_branch
        %299 = sbr.rel (%p297) target = $region20
      $region19: #{tpu_custom_call.1} parent=11 // pred_region
        _
      $region20: #{tpu_custom_call.1} parent=11 // pred_fallthru
        _
      // Predicated region
      $region21: #{tpu_custom_call.1} parent=11 // pred_check
        %p300 = pneg %p106
      $region22: #{tpu_custom_call.1} parent=11 // pred_check_branch
        %302 = sbr.rel (%p300) target = $region24
      $region23: #{tpu_custom_call.1} parent=11 // pred_region
        _
      $region24: #{tpu_custom_call.1} parent=11 // pred_fallthru
        _
      // Predicated region
      $region25: #{tpu_custom_call.1} parent=11 // pred_check
        %p303 = pneg %p127
      $region26: #{tpu_custom_call.1} parent=11 // pred_check_branch
        %305 = sbr.rel (%p303) target = $region28
      $region27: #{tpu_custom_call.1} parent=11 // pred_region
        _
      $region28: #{tpu_custom_call.1} parent=11 // pred_fallthru
        _
      // Predicated region
      $region29: #{tpu_custom_call.1} parent=11 // pred_check
        %p306 = pneg %p148
      $region30: #{tpu_custom_call.1} parent=11 // pred_check_branch
        %308 = sbr.rel (%p306) target = $region32
      $region31: #{tpu_custom_call.1} parent=11 // pred_region
        _
      $region32: #{tpu_custom_call.1} parent=11 // pred_fallthru
        _
      // Predicated region
      $region33: #{tpu_custom_call.1} parent=11 // pred_check
        %p309 = pneg %p169
      $region34: #{tpu_custom_call.1} parent=11 // pred_check_branch
        %311 = sbr.rel (%p309) target = $region36
      $region35: #{tpu_custom_call.1} parent=11 // pred_region
        _
      $region36: #{tpu_custom_call.1} parent=11 // pred_fallthru
        _
      // Predicated region
      $region37: #{tpu_custom_call.1} parent=11 // pred_check
        %p312 = pneg %p190
      $region38: #{tpu_custom_call.1} parent=11 // pred_check_branch
        %314 = sbr.rel (%p312) target = $region40
      $region39: #{tpu_custom_call.1} parent=11 // pred_region
        _
      $region40: #{tpu_custom_call.1} parent=11 // pred_fallthru
        _
      // Predicated region
      $region41: #{tpu_custom_call.1} parent=11 // pred_check
        %p315 = pneg %p211
      $region42: #{tpu_custom_call.1} parent=11 // pred_check_branch
        %317 = sbr.rel (%p315) target = $region44
      $region43: #{tpu_custom_call.1} parent=11 // pred_region
        _
      $region44: #{tpu_custom_call.1} parent=11 // pred_fallthru
        _
      // Predicated region
      $region45: #{tpu_custom_call.1} parent=11 // pred_check
        %p318 = pneg %p232
      $region46: #{tpu_custom_call.1} parent=11 // pred_check_branch
        %320 = sbr.rel (%p318) target = $region48
      $region47: #{tpu_custom_call.1} parent=11 // pred_region
        _
      $region48: #{tpu_custom_call.1} parent=11 // pred_fallthru
        _
      // Predicated region
      $region49: #{tpu_custom_call.1} parent=11 // pred_check
        %p321 = pneg %p253
      $region50: #{tpu_custom_call.1} parent=11 // pred_check_branch
        %323 = sbr.rel (%p321) target = $region52
      $region51: #{tpu_custom_call.1} parent=11 // pred_region
        _
      $region52: #{tpu_custom_call.1} parent=11 // pred_fallthru
        _
    $region12: #{tpu_custom_call.1} parent=5 // pred_fallthru
      _
    %p324 = scmp.lt.s32.totalorder %s17, 4
    // Predicated region
    $region53: #{tpu_custom_call.1} parent=5 // pred_check
      %p325 = pneg %p324
    $region54: #{tpu_custom_call.1} parent=5 // pred_check_branch
      %327 = sbr.rel (%p325) target = $region56
    $region55: #{tpu_custom_call.1} parent=5 // pred_region
      // Predicated region
      $region57: #{tpu_custom_call.1} parent=55 // pred_check
        %p328 = pneg %p37
      $region58: #{tpu_custom_call.1} parent=55 // pred_check_branch
        %330 = sbr.rel (%p328) target = $region60
      $region59: #{tpu_custom_call.1} parent=55 // pred_region
        %s331 = smul.u32 2, %s17
        %p332 = scmp.lt.s32.totalorder %s331, 7
        %s333 = scalar_select %p332, %s331, 7
        %s334 = smul.addr %s333, 8
        %s335 = scalar_lea.vmem %s0, %s334
        %s336 = smul.u32 2, %s17
      $region60: #{tpu_custom_call.1} parent=55 // pred_fallthru
        _
    $region56: #{tpu_custom_call.1} parent=5 // pred_fallthru
      _
    %p337 = scmp.le.s32.totalorder 1, %s17
    %p338 = scmp.lt.s32.totalorder %s17, 5
    %p339 = pnand %p337, %p338
    %p340 = pneg %p339
    // Predicated region
    $region61: #{tpu_custom_call.1} parent=5 // pred_check
      _
    $region62: #{tpu_custom_call.1} parent=5 // pred_check_branch
      %342 = sbr.rel (%p339) target = $region64
    $region63: #{tpu_custom_call.1} parent=5 // pred_region
      %s343 = ssub.s32 %s17, 1
      %s344 = smul.u32 2, %s22
      %p345 = scmp.lt.s32.totalorder %s344, 7
      %s346 = scalar_select %p345, %s344, 7
      %s347 = smul.addr %s346, 8
      %s348 = scalar_lea.vmem %s0, %s347
      %p349 = pneg %p43
      %p350 = pneg %p40
      %p351 = pneg %p64
      %p352 = pneg %p61
      %p353 = pneg %p85
      %p354 = pneg %p82
      %p355 = pneg %p106
      %p356 = pneg %p103
      %p357 = pneg %p127
      %p358 = pneg %p124
      %p359 = pneg %p148
      %p360 = pneg %p145
      %p361 = pneg %p169
      %p362 = pneg %p166
      %p363 = pneg %p190
      %p364 = pneg %p187
      %p365 = pneg %p211
      %p366 = pneg %p208
      %p367 = pneg %p232
      %p368 = pneg %p229
      %p369 = pneg %p253
      %p370 = pneg %p250
      %p371 = pneg %p279
      %p372 = pneg %p276
      %s373 = smul.u32 2, %s22
      %p374 = scmp.lt.s32.totalorder %s373, 7
      %s375 = scalar_select %p374, %s373, 7
      %s376 = smul.addr %s375, 8
      %s377 = scalar_lea.vmem %s11, %s376
      %s378 = smul.u32 2, %s22
      %p379 = scmp.lt.s32.totalorder %s378, 7
      %s380 = scalar_select %p379, %s378, 7
      %s381 = smul.addr %s380, 8
      %s382 = scalar_lea.vmem %s0, %s381
      %s383 = smul.u32 2, %s22
      %s384 = smul.u32 2, %s22
      %p385 = scmp.lt.s32.totalorder %s384, 7
      %s386 = scalar_select %p385, %s384, 7
      %s387 = smul.addr %s386, 8
      %s388 = scalar_lea.vmem %s11, %s387
      %s389 = smul.u32 2, %s22
      %v391 = vld [vmem:[%s382] sm:$0xff]
      %v392 = vld [vmem:[%s382 + $0x8] sm:$0xff]
      %v393 = vpack.c.bf16 %v392, %v391
      %v394 = vld [vmem:[%s1] sm:$0xf]
      %v395 = vld [vmem:[%s1 + $0x4] sm:$0xf]
      %v396 = vld [vmem:[%s1 + $0x8] sm:$0xf]
      %v397 = vld [vmem:[%s1 + $0xc] sm:$0xf]
      %v398 = vld [vmem:[%s2] sm:$0x1]
      %v400 = vlaneseq
      %v401 = vshrl.u32 %v400, 7
      %v402 = vsub.s32 0, %v401
      %v403 = vrot.slane %v398, %v402
      %v409 = vunpack.c.l.b16 %v394
      %v410 = vunpack.c.l.b16 %v395
      %v411 = vunpack.c.l.b16 %v396
      %v412 = vunpack.c.l.b16 %v397
      %v413 = vpack.c.b16 %v410, %v409
      %v414 = vpack.c.b16 %v412, %v411
      %vm417 = vcmask 261120
      %v419 = vsel %vm417, %v393, 0
      %421 = vmatprep.subr.bf16.mxu0 0
      %422 = vmatpush1.bf16.msra.mxu0 0
      %423 = vmatprep.subr.bf16.mxu0 0
      %424 = vmatpush1.bf16.msra.mxu0 0
      %425 = vmatprep.subr.bf16.mxu0 0
      %426 = vmatpush1.bf16.msra.mxu0 0
      %427 = vmatprep.subr.bf16.mxu0 0
      %428 = vmatpush1.bf16.msra.mxu0 0
      %429 = vmatprep.subr.bf16.mxu0 0
      %430 = vmatpush1.bf16.msra.mxu0 0
      %431 = vmatprep.subr.bf16.mxu0 0
      %432 = vmatpush1.bf16.msra.mxu0 0
      %433 = vmatprep.subr.bf16.mxu0 0
      %434 = vmatpush1.bf16.msra.mxu0 %v414
      %435 = vmatprep.subr.bf16.mxu0 0
      %436 = vmatpush1.bf16.msra.mxu0 %v413
      %437 = vmatprep.subr.bf16.mxu0 0
      %438 = vmatpush2.bf16.msra.mxu0 0
      %439 = vmatprep.subr.bf16.mxu0 0
      %440 = vmatpush2.bf16.msra.mxu0 0
      %441 = vmatprep.subr.bf16.mxu0 0
      %442 = vmatpush2.bf16.msra.mxu0 0
      %443 = vmatprep.subr.bf16.mxu0 0
      %444 = vmatpush2.bf16.msra.mxu0 0
      %445 = vmatprep.subr.bf16.mxu0 0
      %446 = vmatpush2.bf16.msra.mxu0 0
      %447 = vmatprep.subr.bf16.mxu0 0
      %448 = vmatpush2.bf16.msra.mxu0 0
      %449 = vmatprep.subr.bf16.mxu0 0
      %450 = vmatpush2.bf16.msra.mxu0 0
      %451 = vmatprep.subr.bf16.mxu0 0
      %452 = vmatpush2.bf16.msra.mxu0 0
      %453 = vmatprep.mubr.bf16.mxu0 0
      %454 = vmatmul.mubr.bf16.gmra.mxu0 %v419
      %v455 = vpop.f32.mrf.mxu0
      %v456 = vadd.f32 %v403, %v455
      %v457 = vpop.f32.mrf.mxu0
      %v458 = vpop.f32.mrf.mxu0
      %v459 = vadd.f32 %v403, %v458
      %v460 = vpop.f32.mrf.mxu0
      %461 = vdwg.mxu0
      %v462 = vld [vmem:[%s3] sm:$0x1]
      %v463 = vld [vmem:[%s4] sm:$0x1]
      %vm464 = vcmask 523264
      %v465 = vsel %vm464, %v456, 0.0
      %466 = vadd.xlane.f32.xlu0 %v465
      %v467 = vpop.xlane.xlu0 %466
      %v468 = vsel %vm464, %v459, 0.0
      %469 = vadd.xlane.f32.xlu0 %v468
      %v470 = vpop.xlane.xlu0 %469
      %v471 = vrcp.pop 64.0
      %v472 = vmul.f32 %v467, %v471
      %v473 = vmul.f32 %v470, %v471
      %v474 = vmul.f32 %v456, %v456
      %v475 = vmul.f32 %v459, %v459
      %v476 = vsel %vm464, %v474, 0.0
      %477 = vadd.xlane.f32.xlu0 %v476
      %v478 = vpop.xlane.xlu0 %477
      %v479 = vsel %vm464, %v475, 0.0
      %480 = vadd.xlane.f32.xlu0 %v479
      %v481 = vpop.xlane.xlu0 %480
      %v482 = vmul.f32 %v478, %v471
      %v483 = vmul.f32 %v481, %v471
      %v484 = vmul.f32 %v472, %v472
      %v485 = vmul.f32 %v473, %v473
      %v486 = vsub.f32 %v482, %v484
      %v487 = vsub.f32 %v483, %v485
      %v488 = vadd.f32 %v486, 1e-05
      %v489 = vadd.f32 %v487, 1e-05
      %v490 = vrsqrt.pop %v488
      %v491 = vrsqrt.pop %v489
      %v492 = vsub.f32 %v456, %v472
      %v493 = vsub.f32 %v459, %v473
      %v494 = vmul.f32 %v492, %v490
      %v495 = vmul.f32 %v493, %v491
      %v497 = vlaneseq
      %v498 = vshrl.u32 %v497, 7
      %v499 = vsub.s32 0, %v498
      %v500 = vrot.slane %v462, %v499
      %v502 = vmul.f32 %v494, %v500
      %v503 = vmul.f32 %v495, %v500
      %v505 = vlaneseq
      %v506 = vshrl.u32 %v505, 7
      %v507 = vsub.s32 0, %v506
      %v508 = vrot.slane %v463, %v507
      %v510 = vadd.f32 %v502, %v508
      %v511 = vadd.f32 %v503, %v508
      %v512 = vmax.f32 %v510, 0.0
      %v513 = vmax.f32 %v511, 0.0
      %v514 = vpack.c.bf16 %v513, %v512
      %v515 = vld [vmem:[%s5] sm:$0xf]
      %v516 = vld [vmem:[%s5 + $0x4] sm:$0xf]
      %v517 = vld [vmem:[%s5 + $0x8] sm:$0xf]
      %v518 = vld [vmem:[%s5 + $0xc] sm:$0xf]
      %v519 = vld [vmem:[%s5 + $0x10] sm:$0xf]
      %v520 = vld [vmem:[%s5 + $0x14] sm:$0xf]
      %v521 = vld [vmem:[%s5 + $0x18] sm:$0xf]
      %v522 = vld [vmem:[%s5 + $0x1c] sm:$0xf]
      %v523 = vld [vmem:[%s6] sm:$0x1]
      %v525 = vlaneseq
      %v526 = vshrl.u32 %v525, 7
      %v527 = vsub.s32 0, %v526
      %v528 = vrot.slane %v523, %v527
      %v538 = vunpack.c.l.b16 %v515
      %v539 = vunpack.c.l.b16 %v516
      %v540 = vunpack.c.l.b16 %v517
      %v541 = vunpack.c.l.b16 %v518
      %v542 = vunpack.c.l.b16 %v519
      %v543 = vunpack.c.l.b16 %v520
      %v544 = vunpack.c.l.b16 %v521
      %v545 = vunpack.c.l.b16 %v522
      %v546 = vpack.c.b16 %v539, %v538
      %v547 = vpack.c.b16 %v541, %v540
      %v548 = vpack.c.b16 %v543, %v542
      %v549 = vpack.c.b16 %v545, %v544
      %v555 = vsel %vm464, %v514, 0
      %557 = vmatprep.subr.bf16.mxu0 0
      %558 = vmatpush1.bf16.msra.mxu0 0
      %559 = vmatprep.subr.bf16.mxu0 0
      %560 = vmatpush1.bf16.msra.mxu0 0
      %561 = vmatprep.subr.bf16.mxu0 0
      %562 = vmatpush1.bf16.msra.mxu0 0
      %563 = vmatprep.subr.bf16.mxu0 0
      %564 = vmatpush1.bf16.msra.mxu0 0
      %565 = vmatprep.subr.bf16.mxu0 0
      %566 = vmatpush1.bf16.msra.mxu0 %v549
      %567 = vmatprep.subr.bf16.mxu0 0
      %568 = vmatpush1.bf16.msra.mxu0 %v548
      %569 = vmatprep.subr.bf16.mxu0 0
      %570 = vmatpush1.bf16.msra.mxu0 %v547
      %571 = vmatprep.subr.bf16.mxu0 0
      %572 = vmatpush1.bf16.msra.mxu0 %v546
      %573 = vmatprep.subr.bf16.mxu0 0
      %574 = vmatpush2.bf16.msra.mxu0 0
      %575 = vmatprep.subr.bf16.mxu0 0
      %576 = vmatpush2.bf16.msra.mxu0 0
      %577 = vmatprep.subr.bf16.mxu0 0
      %578 = vmatpush2.bf16.msra.mxu0 0
      %579 = vmatprep.subr.bf16.mxu0 0
      %580 = vmatpush2.bf16.msra.mxu0 0
      %581 = vmatprep.subr.bf16.mxu0 0
      %582 = vmatpush2.bf16.msra.mxu0 0
      %583 = vmatprep.subr.bf16.mxu0 0
      %584 = vmatpush2.bf16.msra.mxu0 0
      %585 = vmatprep.subr.bf16.mxu0 0
      %586 = vmatpush2.bf16.msra.mxu0 0
      %587 = vmatprep.subr.bf16.mxu0 0
      %588 = vmatpush2.bf16.msra.mxu0 0
      %589 = vmatprep.mubr.bf16.mxu0 0
      %590 = vmatmul.mubr.bf16.gmra.mxu0 %v555
      %v591 = vpop.f32.mrf.mxu0
      %v592 = vadd.f32 %v528, %v591
      %v593 = vpop.f32.mrf.mxu0
      %v594 = vpop.f32.mrf.mxu0
      %v595 = vadd.f32 %v528, %v594
      %v596 = vpop.f32.mrf.mxu0
      %597 = vdwg.mxu0
      %v598 = vld [vmem:[%s7] sm:$0x1]
      %v599 = vld [vmem:[%s8] sm:$0x1]
      %v600 = vsel %vm464, %v592, 0.0
      %601 = vadd.xlane.f32.xlu0 %v600
      %v602 = vpop.xlane.xlu0 %601
      %v603 = vsel %vm464, %v595, 0.0
      %604 = vadd.xlane.f32.xlu0 %v603
      %v605 = vpop.xlane.xlu0 %604
      %v606 = vmul.f32 %v602, %v471
      %v607 = vmul.f32 %v605, %v471
      %v608 = vmul.f32 %v592, %v592
      %v609 = vmul.f32 %v595, %v595
      %v610 = vsel %vm464, %v608, 0.0
      %611 = vadd.xlane.f32.xlu0 %v610
      %v612 = vpop.xlane.xlu0 %611
      %v613 = vsel %vm464, %v609, 0.0
      %614 = vadd.xlane.f32.xlu0 %v613
      %v615 = vpop.xlane.xlu0 %614
      %v616 = vmul.f32 %v612, %v471
      %v617 = vmul.f32 %v615, %v471
      %v618 = vmul.f32 %v606, %v606
      %v619 = vmul.f32 %v607, %v607
      %v620 = vsub.f32 %v616, %v618
      %v621 = vsub.f32 %v617, %v619
      %v622 = vadd.f32 %v620, 1e-05
      %v623 = vadd.f32 %v621, 1e-05
      %v624 = vrsqrt.pop %v622
      %v625 = vrsqrt.pop %v623
      %v626 = vsub.f32 %v592, %v606
      %v627 = vsub.f32 %v595, %v607
      %v628 = vmul.f32 %v626, %v624
      %v629 = vmul.f32 %v627, %v625
      %v631 = vlaneseq
      %v632 = vshrl.u32 %v631, 7
      %v633 = vsub.s32 0, %v632
      %v634 = vrot.slane %v598, %v633
      %v636 = vmul.f32 %v628, %v634
      %v637 = vmul.f32 %v629, %v634
      %v639 = vlaneseq
      %v640 = vshrl.u32 %v639, 7
      %v641 = vsub.s32 0, %v640
      %v642 = vrot.slane %v599, %v641
      %v644 = vadd.f32 %v636, %v642
      %v645 = vadd.f32 %v637, %v642
      %v646 = vmax.f32 %v644, 0.0
      %v647 = vmax.f32 %v645, 0.0
      %v648 = vpack.c.bf16 %v647, %v646
      %v649 = vld [vmem:[%s9] sm:$0xf]
      %v650 = vld [vmem:[%s9 + $0x4] sm:$0xf]
      %v651 = vld [vmem:[%s9 + $0x8] sm:$0xf]
      %v652 = vld [vmem:[%s9 + $0xc] sm:$0xf]
      %v653 = vld [vmem:[%s9 + $0x10] sm:$0xf]
      %v654 = vld [vmem:[%s9 + $0x14] sm:$0xf]
      %v655 = vld [vmem:[%s9 + $0x18] sm:$0xf]
      %v656 = vld [vmem:[%s9 + $0x1c] sm:$0xf]
      %v657 = vld [vmem:[%s10] sm:$0x1]
      %v659 = vlaneseq
      %v660 = vshrl.u32 %v659, 7
      %v661 = vsub.s32 0, %v660
      %v662 = vrot.slane %v657, %v661
      %v672 = vunpack.c.l.b16 %v649
      %v673 = vunpack.c.l.b16 %v650
      %v674 = vunpack.c.l.b16 %v651
      %v675 = vunpack.c.l.b16 %v652
      %v676 = vunpack.c.l.b16 %v653
      %v677 = vunpack.c.l.b16 %v654
      %v678 = vunpack.c.l.b16 %v655
      %v679 = vunpack.c.l.b16 %v656
      %v680 = vpack.c.b16 %v673, %v672
      %v681 = vpack.c.b16 %v675, %v674
      %v682 = vpack.c.b16 %v677, %v676
      %v683 = vpack.c.b16 %v679, %v678
      %v689 = vsel %vm464, %v648, 0
      %691 = vmatprep.subr.bf16.mxu0 0
      %692 = vmatpush1.bf16.msra.mxu0 0
      %693 = vmatprep.subr.bf16.mxu0 0
      %694 = vmatpush1.bf16.msra.mxu0 0
      %695 = vmatprep.subr.bf16.mxu0 0
      %696 = vmatpush1.bf16.msra.mxu0 0
      %697 = vmatprep.subr.bf16.mxu0 0
      %698 = vmatpush1.bf16.msra.mxu0 0
      %699 = vmatprep.subr.bf16.mxu0 0
      %700 = vmatpush1.bf16.msra.mxu0 %v683
      %701 = vmatprep.subr.bf16.mxu0 0
      %702 = vmatpush1.bf16.msra.mxu0 %v682
      %703 = vmatprep.subr.bf16.mxu0 0
      %704 = vmatpush1.bf16.msra.mxu0 %v681
      %705 = vmatprep.subr.bf16.mxu0 0
      %706 = vmatpush1.bf16.msra.mxu0 %v680
      %707 = vmatprep.subr.bf16.mxu0 0
      %708 = vmatpush2.bf16.msra.mxu0 0
      %709 = vmatprep.subr.bf16.mxu0 0
      %710 = vmatpush2.bf16.msra.mxu0 0
      %711 = vmatprep.subr.bf16.mxu0 0
      %712 = vmatpush2.bf16.msra.mxu0 0
      %713 = vmatprep.subr.bf16.mxu0 0
      %714 = vmatpush2.bf16.msra.mxu0 0
      %715 = vmatprep.subr.bf16.mxu0 0
      %716 = vmatpush2.bf16.msra.mxu0 0
      %717 = vmatprep.subr.bf16.mxu0 0
      %718 = vmatpush2.bf16.msra.mxu0 0
      %719 = vmatprep.subr.bf16.mxu0 0
      %720 = vmatpush2.bf16.msra.mxu0 0
      %721 = vmatprep.subr.bf16.mxu0 0
      %722 = vmatpush2.bf16.msra.mxu0 0
      %723 = vmatprep.mubr.bf16.mxu0 0
      %724 = vmatmul.mubr.bf16.gmra.mxu0 %v689
      %v725 = vpop.f32.mrf.mxu0
      %v726 = vadd.f32 %v662, %v725
      %v727 = vpop.f32.mrf.mxu0
      %v728 = vpop.f32.mrf.mxu0
      %v729 = vadd.f32 %v662, %v728
      %v730 = vpop.f32.mrf.mxu0
      %731 = vdwg.mxu0
      %v732 = vxor.u32 %v726, 2147483648
      %v733 = vxor.u32 %v729, 2147483648
      %v734 = vmul.f32 %v732, 1.442695
      %v735 = vpow.pop %v734
      %v736 = vmul.f32 %v733, 1.442695
      %v737 = vpow.pop %v736
      %v738 = vadd.f32 %v735, 1.0
      %v739 = vadd.f32 %v737, 1.0
      %v740 = vrcp.pop %v738
      %v741 = vmul.f32 1.0, %v740
      %v742 = vrcp.pop %v739
      %v743 = vmul.f32 1.0, %v742
      %vm744 = vcmask 31744
      %745 = vst.msk [vmem:[%s388] sm:$0xff] %vm744, %v741
      %746 = vst.msk [vmem:[%s388 + $0x8] sm:$0xff] %vm744, %v743
      %s747 = smul.u32 2, %s22
      %p748 = scmp.lt.s32.totalorder %s747, 7
      %s749 = scalar_select %p748, %s747, 7
      %s750 = smul.addr %s749, 8
      %s751 = scalar_lea.vmem %s11, %s750
      // Predicated region
      $region65: #{tpu_custom_call.1} parent=63 // pred_check
        %p752 = pneg %p276
      $region66: #{tpu_custom_call.1} parent=63 // pred_check_branch
        %754 = sbr.rel (%p752) target = $region68
      $region67: #{tpu_custom_call.1} parent=63 // pred_region
        %s755 = smul.u32 2, %s22
      $region68: #{tpu_custom_call.1} parent=63 // pred_fallthru
        _
    $region64: #{tpu_custom_call.1} parent=5 // pred_fallthru
      _
    %p756 = scmp.le.s32.totalorder 2, %s17
    // Predicated region
    $region69: #{tpu_custom_call.1} parent=5 // pred_check
      %p757 = pneg %p756
    $region70: #{tpu_custom_call.1} parent=5 // pred_check_branch
      %759 = sbr.rel (%p757) target = $region72
    $region71: #{tpu_custom_call.1} parent=5 // pred_region
      %s760 = ssub.s32 %s17, 2
      // Predicated region
      $region73: #{tpu_custom_call.1} parent=71 // pred_check
        %p761 = pneg %p282
      $region74: #{tpu_custom_call.1} parent=71 // pred_check_branch
        %763 = sbr.rel (%p761) target = $region76
      $region75: #{tpu_custom_call.1} parent=71 // pred_region
        %s764 = smul.u32 2, %s23
        %p765 = scmp.lt.s32.totalorder %s764, 7
        %s766 = scalar_select %p765, %s764, 7
        %s767 = smul.addr %s766, 8
        %s768 = scalar_lea.vmem %s11, %s767
      $region76: #{tpu_custom_call.1} parent=71 // pred_fallthru
        _
    $region72: #{tpu_custom_call.1} parent=5 // pred_fallthru
      _
  $region6: #{tpu_custom_call.1} parent=0 // loop_footer
    %s21 = sadd.s32 1, %s17
  $region7: #{tpu_custom_call.1} parent=0 // loop_footer_branch
    %16 = sbr.rel target = $region3
  $region8: #{tpu_custom_call.1} parent=0 // loop_exit
    _

</llo_original>
